<compile_context>
chip_gen: v7x
topology: tpu7x:2x2x1
jax: 0.10.0
libtpu: 0.0.40
codegen_flags: <defaults>
</compile_context>

<pallas_src>
import jax
import jax.numpy as jnp
from jax.experimental import pallas as pl
from jax.experimental.pallas import tpu as pltpu


def mlp_kernel(x_ref, w0_ref, b0_ref, w1_ref, b1_ref, o_ref):
    # Layer 0: bf16 (or f32) matmul on the MXU with f32 accumulation; f32 epilogue.
    h = jnp.dot(x_ref[...], w0_ref[...], preferred_element_type=jnp.float32)
    h = jnp.maximum(h + b0_ref[...], 0.0)
    # Layer 1: cast activations back to the compute dtype for the MXU, accumulate
    # in f32, final bias + ReLU in f32 (with_final_activation=True).
    y = jnp.dot(h.astype(w1_ref.dtype), w1_ref[...],
                preferred_element_type=jnp.float32)
    y = jnp.maximum(y + b1_ref[...], 0.0)
    o_ref[...] = y.astype(o_ref.dtype)


def _round_up(n, m):
    return ((n + m - 1) // m) * m


def mlp_forward(x, w0, b0, w1, b1, *, tile_m=512, compute_dtype=jnp.bfloat16):
    """x: (N, nin); w0: (nin, nhid) (= torch W0.T); b0: (1, nhid);
    w1: (nhid, nout) (= torch W1.T); b1: (1, nout).  Returns (N, nout) float32."""
    N, nin = x.shape
    nhid = w0.shape[1]
    nout = w1.shape[1]
    assert w0.shape == (nin, nhid) and w1.shape == (nhid, nout)
    assert b0.shape == (1, nhid) and b1.shape == (1, nout)

    # Row tile: multiple of the sublane packing of the compute dtype (16 rows/vreg
    # for bf16, 8 for f32); never larger than the (padded) batch.
    sub = 16 if jnp.dtype(compute_dtype).itemsize == 2 else 8
    tile_m = min(tile_m, _round_up(N, sub))
    tile_m = max(sub, (tile_m // sub) * sub)

    # Pad the batch to a tile multiple instead of asserting divisibility.
    n_pad = _round_up(N, tile_m)
    if n_pad != N:
        x = jnp.pad(x, ((0, n_pad - N), (0, 0)))
    grid = (n_pad // tile_m,)

    # Cast matmul operands to the MXU-native dtype; keep biases (epilogue) in f32.
    xc = x.astype(compute_dtype)
    w0c = w0.astype(compute_dtype)
    w1c = w1.astype(compute_dtype)
    b0f = b0.astype(jnp.float32)
    b1f = b1.astype(jnp.float32)

    # Explicit scoped-VMEM budget: 2x (x tile) + 2x (f32 out tile) + weights
    # (budgeted double in case single-buffering is unavailable) + biases + the
    # (tile_m, nhid) h intermediate, with headroom for (8,128) alignment padding
    # and compiler scratch.  Clamped to v7x's 64 MiB physical VMEM per core.
    csize = jnp.dtype(compute_dtype).itemsize
    vmem_bytes = (
        2 * tile_m * nin * csize                     # double-buffered x tiles
        + 2 * tile_m * nout * 4                      # double-buffered out tiles
        + 2 * (nin * nhid + nhid * nout) * csize     # weights
        + (nhid + nout) * 4                          # biases
        + tile_m * nhid * (4 + csize)                # h (f32) + its cast
    )
    vmem_bytes = min(max(int(1.5 * vmem_bytes) + (4 << 20), 8 << 20), 64 << 20)

    out_shape = jax.ShapeDtypeStruct((n_pad, nout), jnp.float32)
    compiler_params = pltpu.CompilerParams(
        dimension_semantics=("parallel",),  # row tiles shard across TCs on v7x
        vmem_limit_bytes=vmem_bytes,
    )

    def build(weight_pipeline_mode):
        def const_spec(shape):
            if weight_pipeline_mode is None:
                return pl.BlockSpec(shape, lambda i: (0, 0))
            return pl.BlockSpec(shape, lambda i: (0, 0),
                                pipeline_mode=weight_pipeline_mode)

        return pl.pallas_call(
            mlp_kernel,
            out_shape=out_shape,
            grid_spec=pltpu.PrefetchScalarGridSpec(
                num_scalar_prefetch=0,
                grid=grid,
                in_specs=[
                    pl.BlockSpec((tile_m, nin), lambda i: (i, 0)),  # x row tile
                    const_spec((nin, nhid)),    # W0 (grid-invariant, resident)
                    const_spec((1, nhid)),      # b0
                    const_spec((nhid, nout)),   # W1 (grid-invariant, resident)
                    const_spec((1, nout)),      # b1
                ],
                out_specs=pl.BlockSpec((tile_m, nout), lambda i: (i, 0)),
            ),
            compiler_params=compiler_params,
        )

    try:
        # Grid-invariant operands only need a single VMEM buffer.
        out = build(pl.Buffered(1))(xc, w0c, b0f, w1c, b1f)
    except Exception:
        # Fallback: default (double) buffering if Buffered(1) is not accepted.
        out = build(None)(xc, w0c, b0f, w1c, b1f)

    return out[:N] if n_pad != N else out


def init_mlp_params(key, nin, nout):
    """Deterministic synthetic init (PyTorch-Linear-style uniform ranges).
    Weights stored directly in (in, out) layout == W.T of torch's (out, in)."""
    nhid = nin
    k0, k1, k2, k3 = jax.random.split(key, 4)
    bound0 = 1.0 / jnp.sqrt(nin)
    bound1 = 1.0 / jnp.sqrt(nhid)
    w0 = jax.random.uniform(k0, (nin, nhid), jnp.float32, -bound0, bound0)
    b0 = jax.random.uniform(k1, (1, nhid), jnp.float32, -bound0, bound0)
    w1 = jax.random.uniform(k2, (nhid, nout), jnp.float32, -bound1, bound1)
    b1 = jax.random.uniform(k3, (1, nout), jnp.float32, -bound1, bound1)
    return w0, b0, w1, b1


def mlp_reference(x, w0, b0, w1, b1, compute_dtype=jnp.bfloat16):
    """Pure-JAX reference using the same mixed precision as the kernel."""
    xc, w0c, w1c = (a.astype(compute_dtype) for a in (x, w0, w1))
    h = jnp.maximum(jnp.dot(xc, w0c, preferred_element_type=jnp.float32) + b0, 0.0)
    y = jnp.maximum(
        jnp.dot(h.astype(compute_dtype), w1c,
                preferred_element_type=jnp.float32) + b1, 0.0)
    return y


if __name__ == "__main__":
    key = jax.random.PRNGKey(0)
    kx, kp = jax.random.split(key)

    # MLP(nin=32, nout=32): small demo shapes.  Real deployments should pad the
    # feature dims to multiples of 128 (lane-dense output, full MXU occupancy).
    nin, nout = 32, 32
    w0, b0, w1, b1 = init_mlp_params(kp, nin, nout)

    # Batch divisible by the row tile: 2 grid steps -> pipelining + both v7x TCs.
    N = 128
    x = jax.random.normal(kx, (N, nin), jnp.float32)
    out = jax.block_until_ready(mlp_forward(x, w0, b0, w1, b1, tile_m=64))
    ref = mlp_reference(x, w0, b0, w1, b1)
    assert out.shape == (N, nout)
    assert jnp.allclose(out, ref, atol=1e-3, rtol=1e-3), "mismatch vs reference"

    # Batch NOT divisible by the tile: exercises the pad-and-slice path.
    N2 = 100
    x2 = jax.random.normal(kx, (N2, nin), jnp.float32)
    out2 = jax.block_until_ready(mlp_forward(x2, w0, b0, w1, b1, tile_m=64))
    ref2 = mlp_reference(x2, w0, b0, w1, b1)
    assert out2.shape == (N2, nout)
    assert jnp.allclose(out2, ref2, atol=1e-3, rtol=1e-3), "mismatch (padded batch)"

    print("KERNEL_OK")
</pallas_src>

<mosaic_0001>
module attributes {stable_mosaic.version = 11 : i64} {
  func.func @mlp_kernel(%arg0: i32, %arg1: memref<64x32xbf16, #tpu.memory_space<vmem>>, %arg2: memref<32x32xbf16, #tpu.memory_space<vmem>>, %arg3: memref<1x32xf32, #tpu.memory_space<vmem>>, %arg4: memref<32x32xbf16, #tpu.memory_space<vmem>>, %arg5: memref<1x32xf32, #tpu.memory_space<vmem>>, %arg6: memref<64x32xf32, #tpu.memory_space<vmem>>) attributes {dimension_semantics = [#tpu.dimension_semantics<parallel>], iteration_bounds = array<i64: 2>, scalar_prefetch = 0 : i64, scratch_operands = 0 : i64, tpu.core_type = #tpu.core_type<tc>, window_params = [{transform_indices = @transform_0, window_bounds = array<i64: 64, 32>}, {pipeline_mode = #tpu.pipeline_mode<synchronous>, transform_indices = @transform_1, window_bounds = array<i64: 32, 32>}, {pipeline_mode = #tpu.pipeline_mode<synchronous>, transform_indices = @transform_2, window_bounds = array<i64: 1, 32>}, {pipeline_mode = #tpu.pipeline_mode<synchronous>, transform_indices = @transform_3, window_bounds = array<i64: 32, 32>}, {pipeline_mode = #tpu.pipeline_mode<synchronous>, transform_indices = @transform_4, window_bounds = array<i64: 1, 32>}, {transform_indices = @transform_5, window_bounds = array<i64: 64, 32>}]} {
    %c0 = arith.constant 0 : index
    %c0_0 = arith.constant 0 : index
    %0 = vector.load %arg1[%c0, %c0_0] : memref<64x32xbf16, #tpu.memory_space<vmem>>, vector<64x32xbf16>
    %c0_1 = arith.constant 0 : index
    %c0_2 = arith.constant 0 : index
    %1 = vector.load %arg2[%c0_1, %c0_2] : memref<32x32xbf16, #tpu.memory_space<vmem>>, vector<32x32xbf16>
    %cst = arith.constant dense<0.000000e+00> : vector<64x32xf32>
    %2 = tpu.matmul %0, %1, %cst {dimension_numbers = #tpu.dot_dimension_numbers<[1], [0], [0], [1], [0, 0, 1, 1], [], []>} : vector<64x32xbf16>, vector<32x32xbf16>, vector<64x32xf32> -> vector<64x32xf32>
    %c0_3 = arith.constant 0 : index
    %c0_4 = arith.constant 0 : index
    %3 = vector.load %arg3[%c0_3, %c0_4] : memref<1x32xf32, #tpu.memory_space<vmem>>, vector<1x32xf32>
    %4 = vector.broadcast %3 : vector<1x32xf32> to vector<64x32xf32>
    %5 = arith.addf %2, %4 : vector<64x32xf32>
    %cst_5 = arith.constant 0.000000e+00 : f32
    %6 = vector.broadcast %cst_5 : f32 to vector<64x32xf32>
    %7 = arith.maximumf %5, %6 : vector<64x32xf32>
    %8 = arith.truncf %7 : vector<64x32xf32> to vector<64x32xbf16>
    %c0_6 = arith.constant 0 : index
    %c0_7 = arith.constant 0 : index
    %9 = vector.load %arg4[%c0_6, %c0_7] : memref<32x32xbf16, #tpu.memory_space<vmem>>, vector<32x32xbf16>
    %cst_8 = arith.constant dense<0.000000e+00> : vector<64x32xf32>
    %10 = tpu.matmul %8, %9, %cst_8 {dimension_numbers = #tpu.dot_dimension_numbers<[1], [0], [0], [1], [0, 0, 1, 1], [], []>} : vector<64x32xbf16>, vector<32x32xbf16>, vector<64x32xf32> -> vector<64x32xf32>
    %c0_9 = arith.constant 0 : index
    %c0_10 = arith.constant 0 : index
    %11 = vector.load %arg5[%c0_9, %c0_10] : memref<1x32xf32, #tpu.memory_space<vmem>>, vector<1x32xf32>
    %12 = vector.broadcast %11 : vector<1x32xf32> to vector<64x32xf32>
    %13 = arith.addf %10, %12 : vector<64x32xf32>
    %cst_11 = arith.constant 0.000000e+00 : f32
    %14 = vector.broadcast %cst_11 : f32 to vector<64x32xf32>
    %15 = arith.maximumf %13, %14 : vector<64x32xf32>
    %c0_12 = arith.constant 0 : index
    %c0_13 = arith.constant 0 : index
    %16 = vector.load %arg6[%c0_12, %c0_13] : memref<64x32xf32, #tpu.memory_space<vmem>>, vector<64x32xf32>
    tpu.vector_store %arg6[%c0_12, %c0_13], %15 {strides = array<i32>} : memref<64x32xf32, #tpu.memory_space<vmem>>, vector<64x32xf32>,
    return
  }
  func.func @transform_0(%arg0: i32) -> (i32, i32) {
    %c0_i32 = arith.constant 0 : i32
    %c0_i32_0 = arith.constant 0 : i32
    return %arg0, %c0_i32 : i32, i32
  }
  func.func @transform_1(%arg0: i32) -> (i32, i32) {
    %c0_i32 = arith.constant 0 : i32
    %c0_i32_0 = arith.constant 0 : i32
    %c0_i32_1 = arith.constant 0 : i32
    return %c0_i32, %c0_i32_0 : i32, i32
  }
  func.func @transform_2(%arg0: i32) -> (i32, i32) {
    %c0_i32 = arith.constant 0 : i32
    %c0_i32_0 = arith.constant 0 : i32
    %c0_i32_1 = arith.constant 0 : i32
    return %c0_i32, %c0_i32_0 : i32, i32
  }
  func.func @transform_3(%arg0: i32) -> (i32, i32) {
    %c0_i32 = arith.constant 0 : i32
    %c0_i32_0 = arith.constant 0 : i32
    %c0_i32_1 = arith.constant 0 : i32
    return %c0_i32, %c0_i32_0 : i32, i32
  }
  func.func @transform_4(%arg0: i32) -> (i32, i32) {
    %c0_i32 = arith.constant 0 : i32
    %c0_i32_0 = arith.constant 0 : i32
    %c0_i32_1 = arith.constant 0 : i32
    return %c0_i32, %c0_i32_0 : i32, i32
  }
  func.func @transform_5(%arg0: i32) -> (i32, i32) {
    %c0_i32 = arith.constant 0 : i32
    %c0_i32_0 = arith.constant 0 : i32
    return %arg0, %c0_i32 : i32, i32
  }
}

module attributes {stable_mosaic.version = 11 : i64} {
  func.func @mlp_kernel(%arg0: i32, %arg1: memref<64x32xbf16, #tpu.memory_space<vmem>>, %arg2: memref<32x32xbf16, #tpu.memory_space<vmem>>, %arg3: memref<1x32xf32, #tpu.memory_space<vmem>>, %arg4: memref<32x32xbf16, #tpu.memory_space<vmem>>, %arg5: memref<1x32xf32, #tpu.memory_space<vmem>>, %arg6: memref<64x32xf32, #tpu.memory_space<vmem>>) attributes {dimension_semantics = [#tpu.dimension_semantics<parallel>], iteration_bounds = array<i64: 2>, scalar_prefetch = 0 : i64, scratch_operands = 0 : i64, tpu.core_type = #tpu.core_type<tc>, window_params = [{transform_indices = @transform_0, window_bounds = array<i64: 64, 32>}, {pipeline_mode = #tpu.pipeline_mode<synchronous>, transform_indices = @transform_1, window_bounds = array<i64: 32, 32>}, {pipeline_mode = #tpu.pipeline_mode<synchronous>, transform_indices = @transform_2, window_bounds = array<i64: 1, 32>}, {pipeline_mode = #tpu.pipeline_mode<synchronous>, transform_indices = @transform_3, window_bounds = array<i64: 32, 32>}, {pipeline_mode = #tpu.pipeline_mode<synchronous>, transform_indices = @transform_4, window_bounds = array<i64: 1, 32>}, {transform_indices = @transform_5, window_bounds = array<i64: 64, 32>}]} {
    %c0 = arith.constant 0 : index
    %c0_0 = arith.constant 0 : index
    %0 = vector.load %arg1[%c0, %c0_0] : memref<64x32xbf16, #tpu.memory_space<vmem>>, vector<64x32xbf16>
    %c0_1 = arith.constant 0 : index
    %c0_2 = arith.constant 0 : index
    %1 = vector.load %arg2[%c0_1, %c0_2] : memref<32x32xbf16, #tpu.memory_space<vmem>>, vector<32x32xbf16>
    %cst = arith.constant dense<0.000000e+00> : vector<64x32xf32>
    %2 = tpu.matmul %0, %1, %cst {dimension_numbers = #tpu.dot_dimension_numbers<[1], [0], [0], [1], [0, 0, 1, 1], [], []>} : vector<64x32xbf16>, vector<32x32xbf16>, vector<64x32xf32> -> vector<64x32xf32>
    %c0_3 = arith.constant 0 : index
    %c0_4 = arith.constant 0 : index
    %3 = vector.load %arg3[%c0_3, %c0_4] : memref<1x32xf32, #tpu.memory_space<vmem>>, vector<1x32xf32>
    %4 = vector.broadcast %3 : vector<1x32xf32> to vector<64x32xf32>
    %5 = arith.addf %2, %4 : vector<64x32xf32>
    %cst_5 = arith.constant 0.000000e+00 : f32
    %6 = vector.broadcast %cst_5 : f32 to vector<64x32xf32>
    %7 = arith.maximumf %5, %6 : vector<64x32xf32>
    %8 = arith.truncf %7 : vector<64x32xf32> to vector<64x32xbf16>
    %c0_6 = arith.constant 0 : index
    %c0_7 = arith.constant 0 : index
    %9 = vector.load %arg4[%c0_6, %c0_7] : memref<32x32xbf16, #tpu.memory_space<vmem>>, vector<32x32xbf16>
    %cst_8 = arith.constant dense<0.000000e+00> : vector<64x32xf32>
    %10 = tpu.matmul %8, %9, %cst_8 {dimension_numbers = #tpu.dot_dimension_numbers<[1], [0], [0], [1], [0, 0, 1, 1], [], []>} : vector<64x32xbf16>, vector<32x32xbf16>, vector<64x32xf32> -> vector<64x32xf32>
    %c0_9 = arith.constant 0 : index
    %c0_10 = arith.constant 0 : index
    %11 = vector.load %arg5[%c0_9, %c0_10] : memref<1x32xf32, #tpu.memory_space<vmem>>, vector<1x32xf32>
    %12 = vector.broadcast %11 : vector<1x32xf32> to vector<64x32xf32>
    %13 = arith.addf %10, %12 : vector<64x32xf32>
    %cst_11 = arith.constant 0.000000e+00 : f32
    %14 = vector.broadcast %cst_11 : f32 to vector<64x32xf32>
    %15 = arith.maximumf %13, %14 : vector<64x32xf32>
    %c0_12 = arith.constant 0 : index
    %c0_13 = arith.constant 0 : index
    %16 = vector.load %arg6[%c0_12, %c0_13] : memref<64x32xf32, #tpu.memory_space<vmem>>, vector<64x32xf32>
    tpu.vector_store %arg6[%c0_12, %c0_13], %15 {strides = array<i32>} : memref<64x32xf32, #tpu.memory_space<vmem>>, vector<64x32xf32>,
    return
  }
  func.func @transform_0(%arg0: i32) -> (i32, i32) {
    %c0_i32 = arith.constant 0 : i32
    %c0_i32_0 = arith.constant 0 : i32
    return %arg0, %c0_i32 : i32, i32
  }
  func.func @transform_1(%arg0: i32) -> (i32, i32) {
    %c0_i32 = arith.constant 0 : i32
    %c0_i32_0 = arith.constant 0 : i32
    %c0_i32_1 = arith.constant 0 : i32
    return %c0_i32, %c0_i32_0 : i32, i32
  }
  func.func @transform_2(%arg0: i32) -> (i32, i32) {
    %c0_i32 = arith.constant 0 : i32
    %c0_i32_0 = arith.constant 0 : i32
    %c0_i32_1 = arith.constant 0 : i32
    return %c0_i32, %c0_i32_0 : i32, i32
  }
  func.func @transform_3(%arg0: i32) -> (i32, i32) {
    %c0_i32 = arith.constant 0 : i32
    %c0_i32_0 = arith.constant 0 : i32
    %c0_i32_1 = arith.constant 0 : i32
    return %c0_i32, %c0_i32_0 : i32, i32
  }
  func.func @transform_4(%arg0: i32) -> (i32, i32) {
    %c0_i32 = arith.constant 0 : i32
    %c0_i32_0 = arith.constant 0 : i32
    %c0_i32_1 = arith.constant 0 : i32
    return %c0_i32, %c0_i32_0 : i32, i32
  }
  func.func @transform_5(%arg0: i32) -> (i32, i32) {
    %c0_i32 = arith.constant 0 : i32
    %c0_i32_0 = arith.constant 0 : i32
    return %arg0, %c0_i32 : i32, i32
  }
}

</mosaic_0001>

<llo_original>
// kernel: tpu_custom_call.1
$region0: #{tpu_custom_call.1}
  #allocation0 [shape = 'u32[]', space=smem, size = 0x4, offset = 0x4, fixed_abs, tag = 'smem constant byte address 0x4 - core index']
  #allocation1 [shape = 'u32[144,128]{1,0:T(1,128)}', space=vmem, size = 0x12000, scoped, tag = 'internal scratch']
  %s0 = inlined_call_operand.vmem [shape: bf16[128,32], index: 0, kind: input, shape index: {}]
  %s1 = inlined_call_operand.vmem [shape: bf16[32,32], index: 1, kind: input, shape index: {}]
  %s2 = inlined_call_operand.vmem [shape: f32[1,32], index: 2, kind: input, shape index: {}]
  %s3 = inlined_call_operand.vmem [shape: bf16[32,32], index: 3, kind: input, shape index: {}]
  %s4 = inlined_call_operand.vmem [shape: f32[1,32], index: 4, kind: input, shape index: {}]
  %s5 = inlined_call_operand.vmem [shape: f32[128,32], index: 5, kind: output, shape index: {}]
  %s6 = sld [smem:[#allocation0]]
  $region53: #{tpu_custom_call.1} parent=0
    _
  %s8 = ssub.s32 1, %s6
  %s9 = scalar_select 0, %s8, %s6
  loop: start=0, step=1, limit=4
  $region2: #{tpu_custom_call.1} parent=0 // loop_pre_header
    _
  $region3: #{tpu_custom_call.1} parent=0 // loop_header
    %s11 = sphi 0, %s15
    %p12 = scmp.ge.s32.totalorder %s11, 4
    %s21 = sphi 0, %s23
    %s24 = sphi 0, %s21
    %s25 = sphi 0, %s24
    %s41 = sphi 0, %s25
    %s45 = sphi 0, %s45
    %s47 = sphi 0, %s45
    %s48 = sphi 0, %s47
    %s62 = sphi 0, %s48
    %s66 = sphi 0, %s66
    %s68 = sphi 0, %s66
    %s69 = sphi 0, %s68
    %s83 = sphi 0, %s69
    %s87 = sphi 0, %s87
    %s89 = sphi 0, %s87
    %s90 = sphi 0, %s89
    %s104 = sphi 0, %s90
    %s108 = sphi 0, %s108
    %s110 = sphi 0, %s108
    %s111 = sphi 0, %s110
    %s125 = sphi 0, %s111
    %s131 = sphi 0, %s133
    %s134 = sphi 0, %s131
    %s135 = sphi 0, %s134
    %s151 = sphi 0, %s135
  $region4: #{tpu_custom_call.1} parent=0 // loop_header_branch
    %14 = sbr.rel (%p12) target = $region8
  $region5: #{tpu_custom_call.1} parent=0 // loop_body
    %s16 = ssub.s32 %s11, 1
    %s17 = ssub.s32 %s11, 2
    %s18 = sadd.s32 %s11, 1
    %s19 = ssub.s32 %s11, %s18
    %p20 = scmp.eq.s32.totalorder %s19, 0
    %s22 = sadd.s32 %s21, 1
    %s23 = scalar_select %p20, %s21, %s22
    %p26 = pneg %p20
    %p27 = scmp.eq.s32.totalorder %s11, 1
    %p28 = por %p26, %p27
    %p29 = scmp.ne.s32.totalorder %s21, %s24
    %p30 = scmp.eq.s32.totalorder %s11, 0
    %p31 = por %p29, %p30
    %p32 = scmp.ne.s32.totalorder %s21, %s24
    %p33 = scmp.eq.s32.totalorder %s16, 1
    %p34 = por %p32, %p33
    %p35 = scmp.ne.s32.totalorder %s24, %s25
    %p36 = scmp.eq.s32.totalorder %s16, 0
    %p37 = por %p35, %p36
    %p38 = scmp.ne.s32.totalorder %s24, %s25
    %p39 = scmp.eq.s32.totalorder %s17, 1
    %p40 = por %p38, %p39
    %p42 = scmp.ne.s32.totalorder %s25, %s41
    %p43 = scmp.eq.s32.totalorder %s17, 0
    %p44 = por %p42, %p43
    %s46 = sadd.s32 %s45, 1
    %p49 = scmp.eq.s32.totalorder %s11, 1
    %p50 = scmp.ne.s32.totalorder %s45, %s47
    %p51 = scmp.eq.s32.totalorder %s11, 0
    %p52 = por %p50, %p51
    %p53 = scmp.ne.s32.totalorder %s45, %s47
    %p54 = scmp.eq.s32.totalorder %s16, 1
    %p55 = por %p53, %p54
    %p56 = scmp.ne.s32.totalorder %s47, %s48
    %p57 = scmp.eq.s32.totalorder %s16, 0
    %p58 = por %p56, %p57
    %p59 = scmp.ne.s32.totalorder %s47, %s48
    %p60 = scmp.eq.s32.totalorder %s17, 1
    %p61 = por %p59, %p60
    %p63 = scmp.ne.s32.totalorder %s48, %s62
    %p64 = scmp.eq.s32.totalorder %s17, 0
    %p65 = por %p63, %p64
    %s67 = sadd.s32 %s66, 1
    %p70 = scmp.eq.s32.totalorder %s11, 1
    %p71 = scmp.ne.s32.totalorder %s66, %s68
    %p72 = scmp.eq.s32.totalorder %s11, 0
    %p73 = por %p71, %p72
    %p74 = scmp.ne.s32.totalorder %s66, %s68
    %p75 = scmp.eq.s32.totalorder %s16, 1
    %p76 = por %p74, %p75
    %p77 = scmp.ne.s32.totalorder %s68, %s69
    %p78 = scmp.eq.s32.totalorder %s16, 0
    %p79 = por %p77, %p78
    %p80 = scmp.ne.s32.totalorder %s68, %s69
    %p81 = scmp.eq.s32.totalorder %s17, 1
    %p82 = por %p80, %p81
    %p84 = scmp.ne.s32.totalorder %s69, %s83
    %p85 = scmp.eq.s32.totalorder %s17, 0
    %p86 = por %p84, %p85
    %s88 = sadd.s32 %s87, 1
    %p91 = scmp.eq.s32.totalorder %s11, 1
    %p92 = scmp.ne.s32.totalorder %s87, %s89
    %p93 = scmp.eq.s32.totalorder %s11, 0
    %p94 = por %p92, %p93
    %p95 = scmp.ne.s32.totalorder %s87, %s89
    %p96 = scmp.eq.s32.totalorder %s16, 1
    %p97 = por %p95, %p96
    %p98 = scmp.ne.s32.totalorder %s89, %s90
    %p99 = scmp.eq.s32.totalorder %s16, 0
    %p100 = por %p98, %p99
    %p101 = scmp.ne.s32.totalorder %s89, %s90
    %p102 = scmp.eq.s32.totalorder %s17, 1
    %p103 = por %p101, %p102
    %p105 = scmp.ne.s32.totalorder %s90, %s104
    %p106 = scmp.eq.s32.totalorder %s17, 0
    %p107 = por %p105, %p106
    %s109 = sadd.s32 %s108, 1
    %p112 = scmp.eq.s32.totalorder %s11, 1
    %p113 = scmp.ne.s32.totalorder %s108, %s110
    %p114 = scmp.eq.s32.totalorder %s11, 0
    %p115 = por %p113, %p114
    %p116 = scmp.ne.s32.totalorder %s108, %s110
    %p117 = scmp.eq.s32.totalorder %s16, 1
    %p118 = por %p116, %p117
    %p119 = scmp.ne.s32.totalorder %s110, %s111
    %p120 = scmp.eq.s32.totalorder %s16, 0
    %p121 = por %p119, %p120
    %p122 = scmp.ne.s32.totalorder %s110, %s111
    %p123 = scmp.eq.s32.totalorder %s17, 1
    %p124 = por %p122, %p123
    %p126 = scmp.ne.s32.totalorder %s111, %s125
    %p127 = scmp.eq.s32.totalorder %s17, 0
    %p128 = por %p126, %p127
    %s129 = ssub.s32 %s11, %s18
    %p130 = scmp.eq.s32.totalorder %s129, 0
    %s132 = sadd.s32 %s131, 1
    %s133 = scalar_select %p130, %s131, %s132
    %p136 = pneg %p130
    %p137 = scmp.eq.s32.totalorder %s11, 1
    %p138 = por %p136, %p137
    %p139 = scmp.ne.s32.totalorder %s131, %s134
    %p140 = scmp.eq.s32.totalorder %s11, 0
    %p141 = por %p139, %p140
    %p142 = scmp.ne.s32.totalorder %s131, %s134
    %p143 = scmp.eq.s32.totalorder %s16, 1
    %p144 = por %p142, %p143
    %p145 = scmp.ne.s32.totalorder %s134, %s135
    %p146 = scmp.eq.s32.totalorder %s16, 0
    %p147 = por %p145, %p146
    %p148 = scmp.ne.s32.totalorder %s134, %s135
    %p149 = scmp.eq.s32.totalorder %s17, 1
    %p150 = por %p148, %p149
    %p152 = scmp.ne.s32.totalorder %s135, %s151
    %p153 = scmp.eq.s32.totalorder %s17, 0
    %p154 = por %p152, %p153
    %p155 = scmp.le.s32.totalorder 1, %s11
    %p156 = scmp.lt.s32.totalorder %s11, 3
    %p157 = pnand %p155, %p156
    %p158 = pneg %p157
    // Predicated region
    $region9: #{tpu_custom_call.1} parent=5 // pred_check
      _
    $region10: #{tpu_custom_call.1} parent=5 // pred_check_branch
      %160 = sbr.rel (%p157) target = $region12
    $region11: #{tpu_custom_call.1} parent=5 // pred_region
      %s161 = ssub.s32 %s11, 1
      // Predicated region
      $region13: #{tpu_custom_call.1} parent=11 // pred_check
        %p162 = pneg %p58
      $region14: #{tpu_custom_call.1} parent=11 // pred_check_branch
        %164 = sbr.rel (%p162) target = $region16
      $region15: #{tpu_custom_call.1} parent=11 // pred_region
        _
      $region16: #{tpu_custom_call.1} parent=11 // pred_fallthru
        _
      // Predicated region
      $region17: #{tpu_custom_call.1} parent=11 // pred_check
        %p165 = pneg %p79
      $region18: #{tpu_custom_call.1} parent=11 // pred_check_branch
        %167 = sbr.rel (%p165) target = $region20
      $region19: #{tpu_custom_call.1} parent=11 // pred_region
        _
      $region20: #{tpu_custom_call.1} parent=11 // pred_fallthru
        _
      // Predicated region
      $region21: #{tpu_custom_call.1} parent=11 // pred_check
        %p168 = pneg %p100
      $region22: #{tpu_custom_call.1} parent=11 // pred_check_branch
        %170 = sbr.rel (%p168) target = $region24
      $region23: #{tpu_custom_call.1} parent=11 // pred_region
        _
      $region24: #{tpu_custom_call.1} parent=11 // pred_fallthru
        _
      // Predicated region
      $region25: #{tpu_custom_call.1} parent=11 // pred_check
        %p171 = pneg %p121
      $region26: #{tpu_custom_call.1} parent=11 // pred_check_branch
        %173 = sbr.rel (%p171) target = $region28
      $region27: #{tpu_custom_call.1} parent=11 // pred_region
        _
      $region28: #{tpu_custom_call.1} parent=11 // pred_fallthru
        _
    $region12: #{tpu_custom_call.1} parent=5 // pred_fallthru
      _
    %p174 = scmp.lt.s32.totalorder %s11, 2
    // Predicated region
    $region29: #{tpu_custom_call.1} parent=5 // pred_check
      %p175 = pneg %p174
    $region30: #{tpu_custom_call.1} parent=5 // pred_check_branch
      %177 = sbr.rel (%p175) target = $region32
    $region31: #{tpu_custom_call.1} parent=5 // pred_region
      // Predicated region
      $region33: #{tpu_custom_call.1} parent=31 // pred_check
        %p178 = pneg %p31
      $region34: #{tpu_custom_call.1} parent=31 // pred_check_branch
        %180 = sbr.rel (%p178) target = $region36
      $region35: #{tpu_custom_call.1} parent=31 // pred_region
        %s181 = smul.u32 8, %s11
        %p182 = scmp.lt.s32.totalorder %s181, 15
        %s183 = scalar_select %p182, %s181, 15
        %s184 = smul.addr %s183, 4
        %s185 = scalar_lea.vmem %s0, %s184
        %s186 = smul.u32 8, %s11
      $region36: #{tpu_custom_call.1} parent=31 // pred_fallthru
        _
    $region32: #{tpu_custom_call.1} parent=5 // pred_fallthru
      _
    %p187 = scmp.le.s32.totalorder 1, %s11
    %p188 = scmp.lt.s32.totalorder %s11, 3
    %p189 = pnand %p187, %p188
    %p190 = pneg %p189
    // Predicated region
    $region37: #{tpu_custom_call.1} parent=5 // pred_check
      _
    $region38: #{tpu_custom_call.1} parent=5 // pred_check_branch
      %192 = sbr.rel (%p189) target = $region40
    $region39: #{tpu_custom_call.1} parent=5 // pred_region
      %s193 = ssub.s32 %s11, 1
      %s194 = smul.u32 8, %s16
      %p195 = scmp.lt.s32.totalorder %s194, 15
      %s196 = scalar_select %p195, %s194, 15
      %s197 = smul.addr %s196, 4
      %s198 = scalar_lea.vmem %s0, %s197
      %p199 = pneg %p37
      %p200 = pneg %p34
      %p201 = pneg %p58
      %p202 = pneg %p55
      %p203 = pneg %p79
      %p204 = pneg %p76
      %p205 = pneg %p100
      %p206 = pneg %p97
      %p207 = pneg %p121
      %p208 = pneg %p118
      %p209 = pneg %p147
      %p210 = pneg %p144
      %s211 = smul.u32 8, %s16
      %p212 = scmp.lt.s32.totalorder %s211, 15
      %s213 = scalar_select %p212, %s211, 15
      %s214 = smul.addr %s213, 8
      %s215 = scalar_lea.vmem %s5, %s214
      %s216 = smul.u32 8, %s16
      %p217 = scmp.lt.s32.totalorder %s216, 15
      %s218 = scalar_select %p217, %s216, 15
      %s219 = smul.addr %s218, 4
      %s220 = scalar_lea.vmem %s0, %s219
      %s221 = smul.u32 8, %s16
      %s222 = smul.u32 8, %s16
      %p223 = scmp.lt.s32.totalorder %s222, 15
      %s224 = scalar_select %p223, %s222, 15
      %s225 = smul.addr %s224, 8
      %s226 = scalar_lea.vmem %s5, %s225
      %s227 = smul.u32 8, %s16
      %v229 = vld [vmem:[%s220] sm:$0xf]
      %v230 = vld [vmem:[%s220 + $0x4] sm:$0xf]
      %v231 = vld [vmem:[%s220 + $0x8] sm:$0xf]
      %v232 = vld [vmem:[%s220 + $0xc] sm:$0xf]
      %v233 = vld [vmem:[%s220 + $0x10] sm:$0xf]
      %v234 = vld [vmem:[%s220 + $0x14] sm:$0xf]
      %v235 = vld [vmem:[%s220 + $0x18] sm:$0xf]
      %v236 = vld [vmem:[%s220 + $0x1c] sm:$0xf]
      %v237 = vld [vmem:[%s1] sm:$0xf]
      %v238 = vld [vmem:[%s1 + $0x4] sm:$0xf]
      %v239 = vld [vmem:[%s1 + $0x8] sm:$0xf]
      %v240 = vld [vmem:[%s1 + $0xc] sm:$0xf]
      %v241 = vld [vmem:[%s2] sm:$0x1]
      %v243 = vlaneseq
      %v244 = vshrl.u32 %v243, 7
      %v245 = vsub.s32 0, %v244
      %v246 = vrot.slane %v241, %v245
      %v256 = vunpack.c.l.b16 %v229
      %v257 = vunpack.c.l.b16 %v230
      %v258 = vunpack.c.l.b16 %v231
      %v259 = vunpack.c.l.b16 %v232
      %v260 = vunpack.c.l.b16 %v233
      %v261 = vunpack.c.l.b16 %v234
      %v262 = vunpack.c.l.b16 %v235
      %v263 = vunpack.c.l.b16 %v236
      %v264 = vpack.c.b16 %v257, %v256
      %v265 = vpack.c.b16 %v259, %v258
      %v266 = vpack.c.b16 %v261, %v260
      %v267 = vpack.c.b16 %v263, %v262
      %v272 = vunpack.c.l.b16 %v237
      %v273 = vunpack.c.l.b16 %v238
      %v274 = vunpack.c.l.b16 %v239
      %v275 = vunpack.c.l.b16 %v240
      %v276 = vpack.c.b16 %v273, %v272
      %v277 = vpack.c.b16 %v275, %v274
      %vm280 = vcmask 261120
      %v282 = vsel %vm280, %v264, 0
      %v285 = vsel %vm280, %v265, 0
      %v288 = vsel %vm280, %v266, 0
      %v291 = vsel %vm280, %v267, 0
      %293 = vmatprep.subr.bf16.mxu0 0
      %294 = vmatpush1.bf16.msra.mxu0 %v276
      %295 = vmatprep.subr.bf16.mxu0 0
      %296 = vmatpush1.bf16.msra.mxu0 %v277
      %297 = vmatprep.subr.bf16.mxu0 0
      %298 = vmatpush1.bf16.msra.mxu0 0
      %299 = vmatprep.subr.bf16.mxu0 0
      %300 = vmatpush1.bf16.msra.mxu0 0
      %301 = vmatprep.subr.bf16.mxu0 0
      %302 = vmatpush1.bf16.msra.mxu0 0
      %303 = vmatprep.subr.bf16.mxu0 0
      %304 = vmatpush1.bf16.msra.mxu0 0
      %305 = vmatprep.subr.bf16.mxu0 0
      %306 = vmatpush1.bf16.msra.mxu0 0
      %307 = vmatprep.subr.bf16.mxu0 0
      %308 = vmatpush1.bf16.msra.mxu0 0
      %309 = vmatprep.subr.bf16.mxu0 0
      %310 = vmatpush1.bf16.msra.mxu0 0
      %311 = vmatprep.subr.bf16.mxu0 0
      %312 = vmatpush1.bf16.msra.mxu0 0
      %313 = vmatprep.subr.bf16.mxu0 0
      %314 = vmatpush1.bf16.msra.mxu0 0
      %315 = vmatprep.subr.bf16.mxu0 0
      %316 = vmatpush1.bf16.msra.mxu0 0
      %317 = vmatprep.subr.bf16.mxu0 0
      %318 = vmatpush1.bf16.msra.mxu0 0
      %319 = vmatprep.subr.bf16.mxu0 0
      %320 = vmatpush1.bf16.msra.mxu0 0
      %321 = vmatprep.subr.bf16.mxu0 0
      %322 = vmatpush1.bf16.msra.mxu0 0
      %323 = vmatprep.subr.bf16.mxu0 0
      %324 = vmatpush1.bf16.msra.mxu0 0
      %325 = vmatprep.mubr.bf16.mxu0 0
      %326 = vmatmul.mubr.bf16.gmra.mrb[0].mxu0 %v282
      %v327 = vpop.f32.mrb[0].mxu0
      %v328 = vadd.f32 %v246, %v327
      %v329 = vpop.f32.mrb[0].mxu0
      %v330 = vpop.f32.mrb[0].mxu0
      %v331 = vadd.f32 %v246, %v330
      %v332 = vpop.f32.mrb[0].mxu0
      %333 = vmatprep.mubr.bf16.mxu0 0
      %334 = vmatmul.mubr.bf16.gmra.mrb[0].mxu0 %v285
      %v335 = vpop.f32.mrb[0].mxu0
      %v336 = vadd.f32 %v246, %v335
      %v337 = vpop.f32.mrb[0].mxu0
      %v338 = vpop.f32.mrb[0].mxu0
      %v339 = vadd.f32 %v246, %v338
      %v340 = vpop.f32.mrb[0].mxu0
      %341 = vmatprep.mubr.bf16.mxu0 0
      %342 = vmatmul.mubr.bf16.gmra.mrb[0].mxu0 %v288
      %v343 = vpop.f32.mrb[0].mxu0
      %v344 = vadd.f32 %v246, %v343
      %v345 = vpop.f32.mrb[0].mxu0
      %v346 = vpop.f32.mrb[0].mxu0
      %v347 = vadd.f32 %v246, %v346
      %v348 = vpop.f32.mrb[0].mxu0
      %349 = vmatprep.mubr.bf16.mxu0 0
      %350 = vmatmul.mubr.bf16.gmra.mrb[0].mxu0 %v291
      %v351 = vpop.f32.mrb[0].mxu0
      %v352 = vadd.f32 %v246, %v351
      %v353 = vpop.f32.mrb[0].mxu0
      %v354 = vpop.f32.mrb[0].mxu0
      %v355 = vadd.f32 %v246, %v354
      %v356 = vpop.f32.mrb[0].mxu0
      %357 = vdwg.mxu0
      %v358 = vmax.f32 %v328, 0.0
      %v359 = vmax.f32 %v331, 0.0
      %v360 = vmax.f32 %v336, 0.0
      %v361 = vmax.f32 %v339, 0.0
      %v362 = vmax.f32 %v344, 0.0
      %v363 = vmax.f32 %v347, 0.0
      %v364 = vmax.f32 %v352, 0.0
      %v365 = vmax.f32 %v355, 0.0
      %v366 = vpack.c.bf16 %v359, %v358
      %v367 = vpack.c.bf16 %v361, %v360
      %v368 = vpack.c.bf16 %v363, %v362
      %v369 = vpack.c.bf16 %v365, %v364
      %v370 = vld [vmem:[%s3] sm:$0xf]
      %v371 = vld [vmem:[%s3 + $0x4] sm:$0xf]
      %v372 = vld [vmem:[%s3 + $0x8] sm:$0xf]
      %v373 = vld [vmem:[%s3 + $0xc] sm:$0xf]
      %v374 = vld [vmem:[%s4] sm:$0x1]
      %v376 = vlaneseq
      %v377 = vshrl.u32 %v376, 7
      %v378 = vsub.s32 0, %v377
      %v379 = vrot.slane %v374, %v378
      %v385 = vunpack.c.l.b16 %v370
      %v386 = vunpack.c.l.b16 %v371
      %v387 = vunpack.c.l.b16 %v372
      %v388 = vunpack.c.l.b16 %v373
      %v389 = vpack.c.b16 %v386, %v385
      %v390 = vpack.c.b16 %v388, %v387
      %v394 = vsel %vm280, %v366, 0
      %v397 = vsel %vm280, %v367, 0
      %v400 = vsel %vm280, %v368, 0
      %v403 = vsel %vm280, %v369, 0
      %405 = vmatprep.subr.bf16.mxu0 0
      %406 = vmatpush1.bf16.msra.mxu0 %v389
      %407 = vmatprep.subr.bf16.mxu0 0
      %408 = vmatpush1.bf16.msra.mxu0 %v390
      %409 = vmatprep.subr.bf16.mxu0 0
      %410 = vmatpush1.bf16.msra.mxu0 0
      %411 = vmatprep.subr.bf16.mxu0 0
      %412 = vmatpush1.bf16.msra.mxu0 0
      %413 = vmatprep.subr.bf16.mxu0 0
      %414 = vmatpush1.bf16.msra.mxu0 0
      %415 = vmatprep.subr.bf16.mxu0 0
      %416 = vmatpush1.bf16.msra.mxu0 0
      %417 = vmatprep.subr.bf16.mxu0 0
      %418 = vmatpush1.bf16.msra.mxu0 0
      %419 = vmatprep.subr.bf16.mxu0 0
      %420 = vmatpush1.bf16.msra.mxu0 0
      %421 = vmatprep.subr.bf16.mxu0 0
      %422 = vmatpush1.bf16.msra.mxu0 0
      %423 = vmatprep.subr.bf16.mxu0 0
      %424 = vmatpush1.bf16.msra.mxu0 0
      %425 = vmatprep.subr.bf16.mxu0 0
      %426 = vmatpush1.bf16.msra.mxu0 0
      %427 = vmatprep.subr.bf16.mxu0 0
      %428 = vmatpush1.bf16.msra.mxu0 0
      %429 = vmatprep.subr.bf16.mxu0 0
      %430 = vmatpush1.bf16.msra.mxu0 0
      %431 = vmatprep.subr.bf16.mxu0 0
      %432 = vmatpush1.bf16.msra.mxu0 0
      %433 = vmatprep.subr.bf16.mxu0 0
      %434 = vmatpush1.bf16.msra.mxu0 0
      %435 = vmatprep.subr.bf16.mxu0 0
      %436 = vmatpush1.bf16.msra.mxu0 0
      %437 = vmatprep.mubr.bf16.mxu0 0
      %438 = vmatmul.mubr.bf16.gmra.mrb[0].mxu0 %v394
      %v439 = vpop.f32.mrb[0].mxu0
      %v440 = vadd.f32 %v379, %v439
      %v441 = vpop.f32.mrb[0].mxu0
      %v442 = vpop.f32.mrb[0].mxu0
      %v443 = vadd.f32 %v379, %v442
      %v444 = vpop.f32.mrb[0].mxu0
      %445 = vmatprep.mubr.bf16.mxu0 0
      %446 = vmatmul.mubr.bf16.gmra.mrb[0].mxu0 %v397
      %v447 = vpop.f32.mrb[0].mxu0
      %v448 = vadd.f32 %v379, %v447
      %v449 = vpop.f32.mrb[0].mxu0
      %v450 = vpop.f32.mrb[0].mxu0
      %v451 = vadd.f32 %v379, %v450
      %v452 = vpop.f32.mrb[0].mxu0
      %453 = vmatprep.mubr.bf16.mxu0 0
      %454 = vmatmul.mubr.bf16.gmra.mrb[0].mxu0 %v400
      %v455 = vpop.f32.mrb[0].mxu0
      %v456 = vadd.f32 %v379, %v455
      %v457 = vpop.f32.mrb[0].mxu0
      %v458 = vpop.f32.mrb[0].mxu0
      %v459 = vadd.f32 %v379, %v458
      %v460 = vpop.f32.mrb[0].mxu0
      %461 = vmatprep.mubr.bf16.mxu0 0
      %462 = vmatmul.mubr.bf16.gmra.mrb[0].mxu0 %v403
      %v463 = vpop.f32.mrb[0].mxu0
      %v464 = vadd.f32 %v379, %v463
      %v465 = vpop.f32.mrb[0].mxu0
      %v466 = vpop.f32.mrb[0].mxu0
      %v467 = vadd.f32 %v379, %v466
      %v468 = vpop.f32.mrb[0].mxu0
      %469 = vdwg.mxu0
      %v470 = vmax.f32 %v440, 0.0
      %v471 = vmax.f32 %v443, 0.0
      %v472 = vmax.f32 %v448, 0.0
      %v473 = vmax.f32 %v451, 0.0
      %v474 = vmax.f32 %v456, 0.0
      %v475 = vmax.f32 %v459, 0.0
      %v476 = vmax.f32 %v464, 0.0
      %v477 = vmax.f32 %v467, 0.0
      %478 = vst.msk [vmem:[%s226] sm:$0xff] %vm280, %v470
      %479 = vst.msk [vmem:[%s226 + $0x8] sm:$0xff] %vm280, %v471
      %480 = vst.msk [vmem:[%s226 + $0x10] sm:$0xff] %vm280, %v472
      %481 = vst.msk [vmem:[%s226 + $0x18] sm:$0xff] %vm280, %v473
      %482 = vst.msk [vmem:[%s226 + $0x20] sm:$0xff] %vm280, %v474
      %483 = vst.msk [vmem:[%s226 + $0x28] sm:$0xff] %vm280, %v475
      %484 = vst.msk [vmem:[%s226 + $0x30] sm:$0xff] %vm280, %v476
      %485 = vst.msk [vmem:[%s226 + $0x38] sm:$0xff] %vm280, %v477
      %s486 = smul.u32 8, %s16
      %p487 = scmp.lt.s32.totalorder %s486, 15
      %s488 = scalar_select %p487, %s486, 15
      %s489 = smul.addr %s488, 8
      %s490 = scalar_lea.vmem %s5, %s489
      // Predicated region
      $region41: #{tpu_custom_call.1} parent=39 // pred_check
        %p491 = pneg %p144
      $region42: #{tpu_custom_call.1} parent=39 // pred_check_branch
        %493 = sbr.rel (%p491) target = $region44
      $region43: #{tpu_custom_call.1} parent=39 // pred_region
        %s494 = smul.u32 8, %s16
      $region44: #{tpu_custom_call.1} parent=39 // pred_fallthru
        _
    $region40: #{tpu_custom_call.1} parent=5 // pred_fallthru
      _
    %p495 = scmp.le.s32.totalorder 2, %s11
    // Predicated region
    $region45: #{tpu_custom_call.1} parent=5 // pred_check
      %p496 = pneg %p495
    $region46: #{tpu_custom_call.1} parent=5 // pred_check_branch
      %498 = sbr.rel (%p496) target = $region48
    $region47: #{tpu_custom_call.1} parent=5 // pred_region
      %s499 = ssub.s32 %s11, 2
      // Predicated region
      $region49: #{tpu_custom_call.1} parent=47 // pred_check
        %p500 = pneg %p150
      $region50: #{tpu_custom_call.1} parent=47 // pred_check_branch
        %502 = sbr.rel (%p500) target = $region52
      $region51: #{tpu_custom_call.1} parent=47 // pred_region
        %s503 = smul.u32 8, %s17
        %p504 = scmp.lt.s32.totalorder %s503, 15
        %s505 = scalar_select %p504, %s503, 15
        %s506 = smul.addr %s505, 8
        %s507 = scalar_lea.vmem %s5, %s506
      $region52: #{tpu_custom_call.1} parent=47 // pred_fallthru
        _
    $region48: #{tpu_custom_call.1} parent=5 // pred_fallthru
      _
  $region6: #{tpu_custom_call.1} parent=0 // loop_footer
    %s15 = sadd.s32 1, %s11
  $region7: #{tpu_custom_call.1} parent=0 // loop_footer_branch
    %10 = sbr.rel target = $region3
  $region8: #{tpu_custom_call.1} parent=0 // loop_exit
    _

// kernel: tpu_custom_call.1
$region0: #{tpu_custom_call.1}
  #allocation0 [shape = 'u32[]', space=smem, size = 0x4, offset = 0x4, fixed_abs, tag = 'smem constant byte address 0x4 - core index']
  #allocation1 [shape = 'u32[144,128]{1,0:T(1,128)}', space=vmem, size = 0x12000, scoped, tag = 'internal scratch']
  %s0 = inlined_call_operand.vmem [shape: bf16[128,32], index: 0, kind: input, shape index: {}]
  %s1 = inlined_call_operand.vmem [shape: bf16[32,32], index: 1, kind: input, shape index: {}]
  %s2 = inlined_call_operand.vmem [shape: f32[1,32], index: 2, kind: input, shape index: {}]
  %s3 = inlined_call_operand.vmem [shape: bf16[32,32], index: 3, kind: input, shape index: {}]
  %s4 = inlined_call_operand.vmem [shape: f32[1,32], index: 4, kind: input, shape index: {}]
  %s5 = inlined_call_operand.vmem [shape: f32[128,32], index: 5, kind: output, shape index: {}]
  %s6 = sld [smem:[#allocation0]]
  $region53: #{tpu_custom_call.1} parent=0
    _
  %s8 = ssub.s32 1, %s6
  %s9 = scalar_select 0, %s8, %s6
  loop: start=0, step=1, limit=4
  $region2: #{tpu_custom_call.1} parent=0 // loop_pre_header
    _
  $region3: #{tpu_custom_call.1} parent=0 // loop_header
    %s11 = sphi 0, %s15
    %p12 = scmp.ge.s32.totalorder %s11, 4
    %s21 = sphi 0, %s23
    %s24 = sphi 0, %s21
    %s25 = sphi 0, %s24
    %s41 = sphi 0, %s25
    %s45 = sphi 0, %s45
    %s47 = sphi 0, %s45
    %s48 = sphi 0, %s47
    %s62 = sphi 0, %s48
    %s66 = sphi 0, %s66
    %s68 = sphi 0, %s66
    %s69 = sphi 0, %s68
    %s83 = sphi 0, %s69
    %s87 = sphi 0, %s87
    %s89 = sphi 0, %s87
    %s90 = sphi 0, %s89
    %s104 = sphi 0, %s90
    %s108 = sphi 0, %s108
    %s110 = sphi 0, %s108
    %s111 = sphi 0, %s110
    %s125 = sphi 0, %s111
    %s131 = sphi 0, %s133
    %s134 = sphi 0, %s131
    %s135 = sphi 0, %s134
    %s151 = sphi 0, %s135
  $region4: #{tpu_custom_call.1} parent=0 // loop_header_branch
    %14 = sbr.rel (%p12) target = $region8
  $region5: #{tpu_custom_call.1} parent=0 // loop_body
    %s16 = ssub.s32 %s11, 1
    %s17 = ssub.s32 %s11, 2
    %s18 = sadd.s32 %s11, 1
    %s19 = ssub.s32 %s11, %s18
    %p20 = scmp.eq.s32.totalorder %s19, 0
    %s22 = sadd.s32 %s21, 1
    %s23 = scalar_select %p20, %s21, %s22
    %p26 = pneg %p20
    %p27 = scmp.eq.s32.totalorder %s11, 1
    %p28 = por %p26, %p27
    %p29 = scmp.ne.s32.totalorder %s21, %s24
    %p30 = scmp.eq.s32.totalorder %s11, 0
    %p31 = por %p29, %p30
    %p32 = scmp.ne.s32.totalorder %s21, %s24
    %p33 = scmp.eq.s32.totalorder %s16, 1
    %p34 = por %p32, %p33
    %p35 = scmp.ne.s32.totalorder %s24, %s25
    %p36 = scmp.eq.s32.totalorder %s16, 0
    %p37 = por %p35, %p36
    %p38 = scmp.ne.s32.totalorder %s24, %s25
    %p39 = scmp.eq.s32.totalorder %s17, 1
    %p40 = por %p38, %p39
    %p42 = scmp.ne.s32.totalorder %s25, %s41
    %p43 = scmp.eq.s32.totalorder %s17, 0
    %p44 = por %p42, %p43
    %s46 = sadd.s32 %s45, 1
    %p49 = scmp.eq.s32.totalorder %s11, 1
    %p50 = scmp.ne.s32.totalorder %s45, %s47
    %p51 = scmp.eq.s32.totalorder %s11, 0
    %p52 = por %p50, %p51
    %p53 = scmp.ne.s32.totalorder %s45, %s47
    %p54 = scmp.eq.s32.totalorder %s16, 1
    %p55 = por %p53, %p54
    %p56 = scmp.ne.s32.totalorder %s47, %s48
    %p57 = scmp.eq.s32.totalorder %s16, 0
    %p58 = por %p56, %p57
    %p59 = scmp.ne.s32.totalorder %s47, %s48
    %p60 = scmp.eq.s32.totalorder %s17, 1
    %p61 = por %p59, %p60
    %p63 = scmp.ne.s32.totalorder %s48, %s62
    %p64 = scmp.eq.s32.totalorder %s17, 0
    %p65 = por %p63, %p64
    %s67 = sadd.s32 %s66, 1
    %p70 = scmp.eq.s32.totalorder %s11, 1
    %p71 = scmp.ne.s32.totalorder %s66, %s68
    %p72 = scmp.eq.s32.totalorder %s11, 0
    %p73 = por %p71, %p72
    %p74 = scmp.ne.s32.totalorder %s66, %s68
    %p75 = scmp.eq.s32.totalorder %s16, 1
    %p76 = por %p74, %p75
    %p77 = scmp.ne.s32.totalorder %s68, %s69
    %p78 = scmp.eq.s32.totalorder %s16, 0
    %p79 = por %p77, %p78
    %p80 = scmp.ne.s32.totalorder %s68, %s69
    %p81 = scmp.eq.s32.totalorder %s17, 1
    %p82 = por %p80, %p81
    %p84 = scmp.ne.s32.totalorder %s69, %s83
    %p85 = scmp.eq.s32.totalorder %s17, 0
    %p86 = por %p84, %p85
    %s88 = sadd.s32 %s87, 1
    %p91 = scmp.eq.s32.totalorder %s11, 1
    %p92 = scmp.ne.s32.totalorder %s87, %s89
    %p93 = scmp.eq.s32.totalorder %s11, 0
    %p94 = por %p92, %p93
    %p95 = scmp.ne.s32.totalorder %s87, %s89
    %p96 = scmp.eq.s32.totalorder %s16, 1
    %p97 = por %p95, %p96
    %p98 = scmp.ne.s32.totalorder %s89, %s90
    %p99 = scmp.eq.s32.totalorder %s16, 0
    %p100 = por %p98, %p99
    %p101 = scmp.ne.s32.totalorder %s89, %s90
    %p102 = scmp.eq.s32.totalorder %s17, 1
    %p103 = por %p101, %p102
    %p105 = scmp.ne.s32.totalorder %s90, %s104
    %p106 = scmp.eq.s32.totalorder %s17, 0
    %p107 = por %p105, %p106
    %s109 = sadd.s32 %s108, 1
    %p112 = scmp.eq.s32.totalorder %s11, 1
    %p113 = scmp.ne.s32.totalorder %s108, %s110
    %p114 = scmp.eq.s32.totalorder %s11, 0
    %p115 = por %p113, %p114
    %p116 = scmp.ne.s32.totalorder %s108, %s110
    %p117 = scmp.eq.s32.totalorder %s16, 1
    %p118 = por %p116, %p117
    %p119 = scmp.ne.s32.totalorder %s110, %s111
    %p120 = scmp.eq.s32.totalorder %s16, 0
    %p121 = por %p119, %p120
    %p122 = scmp.ne.s32.totalorder %s110, %s111
    %p123 = scmp.eq.s32.totalorder %s17, 1
    %p124 = por %p122, %p123
    %p126 = scmp.ne.s32.totalorder %s111, %s125
    %p127 = scmp.eq.s32.totalorder %s17, 0
    %p128 = por %p126, %p127
    %s129 = ssub.s32 %s11, %s18
    %p130 = scmp.eq.s32.totalorder %s129, 0
    %s132 = sadd.s32 %s131, 1
    %s133 = scalar_select %p130, %s131, %s132
    %p136 = pneg %p130
    %p137 = scmp.eq.s32.totalorder %s11, 1
    %p138 = por %p136, %p137
    %p139 = scmp.ne.s32.totalorder %s131, %s134
    %p140 = scmp.eq.s32.totalorder %s11, 0
    %p141 = por %p139, %p140
    %p142 = scmp.ne.s32.totalorder %s131, %s134
    %p143 = scmp.eq.s32.totalorder %s16, 1
    %p144 = por %p142, %p143
    %p145 = scmp.ne.s32.totalorder %s134, %s135
    %p146 = scmp.eq.s32.totalorder %s16, 0
    %p147 = por %p145, %p146
    %p148 = scmp.ne.s32.totalorder %s134, %s135
    %p149 = scmp.eq.s32.totalorder %s17, 1
    %p150 = por %p148, %p149
    %p152 = scmp.ne.s32.totalorder %s135, %s151
    %p153 = scmp.eq.s32.totalorder %s17, 0
    %p154 = por %p152, %p153
    %p155 = scmp.le.s32.totalorder 1, %s11
    %p156 = scmp.lt.s32.totalorder %s11, 3
    %p157 = pnand %p155, %p156
    %p158 = pneg %p157
    // Predicated region
    $region9: #{tpu_custom_call.1} parent=5 // pred_check
      _
    $region10: #{tpu_custom_call.1} parent=5 // pred_check_branch
      %160 = sbr.rel (%p157) target = $region12
    $region11: #{tpu_custom_call.1} parent=5 // pred_region
      %s161 = ssub.s32 %s11, 1
      // Predicated region
      $region13: #{tpu_custom_call.1} parent=11 // pred_check
        %p162 = pneg %p58
      $region14: #{tpu_custom_call.1} parent=11 // pred_check_branch
        %164 = sbr.rel (%p162) target = $region16
      $region15: #{tpu_custom_call.1} parent=11 // pred_region
        _
      $region16: #{tpu_custom_call.1} parent=11 // pred_fallthru
        _
      // Predicated region
      $region17: #{tpu_custom_call.1} parent=11 // pred_check
        %p165 = pneg %p79
      $region18: #{tpu_custom_call.1} parent=11 // pred_check_branch
        %167 = sbr.rel (%p165) target = $region20
      $region19: #{tpu_custom_call.1} parent=11 // pred_region
        _
      $region20: #{tpu_custom_call.1} parent=11 // pred_fallthru
        _
      // Predicated region
      $region21: #{tpu_custom_call.1} parent=11 // pred_check
        %p168 = pneg %p100
      $region22: #{tpu_custom_call.1} parent=11 // pred_check_branch
        %170 = sbr.rel (%p168) target = $region24
      $region23: #{tpu_custom_call.1} parent=11 // pred_region
        _
      $region24: #{tpu_custom_call.1} parent=11 // pred_fallthru
        _
      // Predicated region
      $region25: #{tpu_custom_call.1} parent=11 // pred_check
        %p171 = pneg %p121
      $region26: #{tpu_custom_call.1} parent=11 // pred_check_branch
        %173 = sbr.rel (%p171) target = $region28
      $region27: #{tpu_custom_call.1} parent=11 // pred_region
        _
      $region28: #{tpu_custom_call.1} parent=11 // pred_fallthru
        _
    $region12: #{tpu_custom_call.1} parent=5 // pred_fallthru
      _
    %p174 = scmp.lt.s32.totalorder %s11, 2
    // Predicated region
    $region29: #{tpu_custom_call.1} parent=5 // pred_check
      %p175 = pneg %p174
    $region30: #{tpu_custom_call.1} parent=5 // pred_check_branch
      %177 = sbr.rel (%p175) target = $region32
    $region31: #{tpu_custom_call.1} parent=5 // pred_region
      // Predicated region
      $region33: #{tpu_custom_call.1} parent=31 // pred_check
        %p178 = pneg %p31
      $region34: #{tpu_custom_call.1} parent=31 // pred_check_branch
        %180 = sbr.rel (%p178) target = $region36
      $region35: #{tpu_custom_call.1} parent=31 // pred_region
        %s181 = smul.u32 8, %s11
        %p182 = scmp.lt.s32.totalorder %s181, 15
        %s183 = scalar_select %p182, %s181, 15
        %s184 = smul.addr %s183, 4
        %s185 = scalar_lea.vmem %s0, %s184
        %s186 = smul.u32 8, %s11
      $region36: #{tpu_custom_call.1} parent=31 // pred_fallthru
        _
    $region32: #{tpu_custom_call.1} parent=5 // pred_fallthru
      _
    %p187 = scmp.le.s32.totalorder 1, %s11
    %p188 = scmp.lt.s32.totalorder %s11, 3
    %p189 = pnand %p187, %p188
    %p190 = pneg %p189
    // Predicated region
    $region37: #{tpu_custom_call.1} parent=5 // pred_check
      _
    $region38: #{tpu_custom_call.1} parent=5 // pred_check_branch
      %192 = sbr.rel (%p189) target = $region40
    $region39: #{tpu_custom_call.1} parent=5 // pred_region
      %s193 = ssub.s32 %s11, 1
      %s194 = smul.u32 8, %s16
      %p195 = scmp.lt.s32.totalorder %s194, 15
      %s196 = scalar_select %p195, %s194, 15
      %s197 = smul.addr %s196, 4
      %s198 = scalar_lea.vmem %s0, %s197
      %p199 = pneg %p37
      %p200 = pneg %p34
      %p201 = pneg %p58
      %p202 = pneg %p55
      %p203 = pneg %p79
      %p204 = pneg %p76
      %p205 = pneg %p100
      %p206 = pneg %p97
      %p207 = pneg %p121
      %p208 = pneg %p118
      %p209 = pneg %p147
      %p210 = pneg %p144
      %s211 = smul.u32 8, %s16
      %p212 = scmp.lt.s32.totalorder %s211, 15
      %s213 = scalar_select %p212, %s211, 15
      %s214 = smul.addr %s213, 8
      %s215 = scalar_lea.vmem %s5, %s214
      %s216 = smul.u32 8, %s16
      %p217 = scmp.lt.s32.totalorder %s216, 15
      %s218 = scalar_select %p217, %s216, 15
      %s219 = smul.addr %s218, 4
      %s220 = scalar_lea.vmem %s0, %s219
      %s221 = smul.u32 8, %s16
      %s222 = smul.u32 8, %s16
      %p223 = scmp.lt.s32.totalorder %s222, 15
      %s224 = scalar_select %p223, %s222, 15
      %s225 = smul.addr %s224, 8
      %s226 = scalar_lea.vmem %s5, %s225
      %s227 = smul.u32 8, %s16
      %v229 = vld [vmem:[%s220] sm:$0xf]
      %v230 = vld [vmem:[%s220 + $0x4] sm:$0xf]
      %v231 = vld [vmem:[%s220 + $0x8] sm:$0xf]
      %v232 = vld [vmem:[%s220 + $0xc] sm:$0xf]
      %v233 = vld [vmem:[%s220 + $0x10] sm:$0xf]
      %v234 = vld [vmem:[%s220 + $0x14] sm:$0xf]
      %v235 = vld [vmem:[%s220 + $0x18] sm:$0xf]
      %v236 = vld [vmem:[%s220 + $0x1c] sm:$0xf]
      %v237 = vld [vmem:[%s1] sm:$0xf]
      %v238 = vld [vmem:[%s1 + $0x4] sm:$0xf]
      %v239 = vld [vmem:[%s1 + $0x8] sm:$0xf]
      %v240 = vld [vmem:[%s1 + $0xc] sm:$0xf]
      %v241 = vld [vmem:[%s2] sm:$0x1]
      %v243 = vlaneseq
      %v244 = vshrl.u32 %v243, 7
      %v245 = vsub.s32 0, %v244
      %v246 = vrot.slane %v241, %v245
      %v256 = vunpack.c.l.b16 %v229
      %v257 = vunpack.c.l.b16 %v230
      %v258 = vunpack.c.l.b16 %v231
      %v259 = vunpack.c.l.b16 %v232
      %v260 = vunpack.c.l.b16 %v233
      %v261 = vunpack.c.l.b16 %v234
      %v262 = vunpack.c.l.b16 %v235
      %v263 = vunpack.c.l.b16 %v236
      %v264 = vpack.c.b16 %v257, %v256
      %v265 = vpack.c.b16 %v259, %v258
      %v266 = vpack.c.b16 %v261, %v260
      %v267 = vpack.c.b16 %v263, %v262
      %v272 = vunpack.c.l.b16 %v237
      %v273 = vunpack.c.l.b16 %v238
      %v274 = vunpack.c.l.b16 %v239
      %v275 = vunpack.c.l.b16 %v240
      %v276 = vpack.c.b16 %v273, %v272
      %v277 = vpack.c.b16 %v275, %v274
      %vm280 = vcmask 261120
      %v282 = vsel %vm280, %v264, 0
      %v285 = vsel %vm280, %v265, 0
      %v288 = vsel %vm280, %v266, 0
      %v291 = vsel %vm280, %v267, 0
      %293 = vmatprep.subr.bf16.mxu0 0
      %294 = vmatpush1.bf16.msra.mxu0 %v276
      %295 = vmatprep.subr.bf16.mxu0 0
      %296 = vmatpush1.bf16.msra.mxu0 %v277
      %297 = vmatprep.subr.bf16.mxu0 0
      %298 = vmatpush1.bf16.msra.mxu0 0
      %299 = vmatprep.subr.bf16.mxu0 0
      %300 = vmatpush1.bf16.msra.mxu0 0
      %301 = vmatprep.subr.bf16.mxu0 0
      %302 = vmatpush1.bf16.msra.mxu0 0
      %303 = vmatprep.subr.bf16.mxu0 0
      %304 = vmatpush1.bf16.msra.mxu0 0
      %305 = vmatprep.subr.bf16.mxu0 0
      %306 = vmatpush1.bf16.msra.mxu0 0
      %307 = vmatprep.subr.bf16.mxu0 0
      %308 = vmatpush1.bf16.msra.mxu0 0
      %309 = vmatprep.subr.bf16.mxu0 0
      %310 = vmatpush1.bf16.msra.mxu0 0
      %311 = vmatprep.subr.bf16.mxu0 0
      %312 = vmatpush1.bf16.msra.mxu0 0
      %313 = vmatprep.subr.bf16.mxu0 0
      %314 = vmatpush1.bf16.msra.mxu0 0
      %315 = vmatprep.subr.bf16.mxu0 0
      %316 = vmatpush1.bf16.msra.mxu0 0
      %317 = vmatprep.subr.bf16.mxu0 0
      %318 = vmatpush1.bf16.msra.mxu0 0
      %319 = vmatprep.subr.bf16.mxu0 0
      %320 = vmatpush1.bf16.msra.mxu0 0
      %321 = vmatprep.subr.bf16.mxu0 0
      %322 = vmatpush1.bf16.msra.mxu0 0
      %323 = vmatprep.subr.bf16.mxu0 0
      %324 = vmatpush1.bf16.msra.mxu0 0
      %325 = vmatprep.mubr.bf16.mxu0 0
      %326 = vmatmul.mubr.bf16.gmra.mrb[0].mxu0 %v282
      %v327 = vpop.f32.mrb[0].mxu0
      %v328 = vadd.f32 %v246, %v327
      %v329 = vpop.f32.mrb[0].mxu0
      %v330 = vpop.f32.mrb[0].mxu0
      %v331 = vadd.f32 %v246, %v330
      %v332 = vpop.f32.mrb[0].mxu0
      %333 = vmatprep.mubr.bf16.mxu0 0
      %334 = vmatmul.mubr.bf16.gmra.mrb[0].mxu0 %v285
      %v335 = vpop.f32.mrb[0].mxu0
      %v336 = vadd.f32 %v246, %v335
      %v337 = vpop.f32.mrb[0].mxu0
      %v338 = vpop.f32.mrb[0].mxu0
      %v339 = vadd.f32 %v246, %v338
      %v340 = vpop.f32.mrb[0].mxu0
      %341 = vmatprep.mubr.bf16.mxu0 0
      %342 = vmatmul.mubr.bf16.gmra.mrb[0].mxu0 %v288
      %v343 = vpop.f32.mrb[0].mxu0
      %v344 = vadd.f32 %v246, %v343
      %v345 = vpop.f32.mrb[0].mxu0
      %v346 = vpop.f32.mrb[0].mxu0
      %v347 = vadd.f32 %v246, %v346
      %v348 = vpop.f32.mrb[0].mxu0
      %349 = vmatprep.mubr.bf16.mxu0 0
      %350 = vmatmul.mubr.bf16.gmra.mrb[0].mxu0 %v291
      %v351 = vpop.f32.mrb[0].mxu0
      %v352 = vadd.f32 %v246, %v351
      %v353 = vpop.f32.mrb[0].mxu0
      %v354 = vpop.f32.mrb[0].mxu0
      %v355 = vadd.f32 %v246, %v354
      %v356 = vpop.f32.mrb[0].mxu0
      %357 = vdwg.mxu0
      %v358 = vmax.f32 %v328, 0.0
      %v359 = vmax.f32 %v331, 0.0
      %v360 = vmax.f32 %v336, 0.0
      %v361 = vmax.f32 %v339, 0.0
      %v362 = vmax.f32 %v344, 0.0
      %v363 = vmax.f32 %v347, 0.0
      %v364 = vmax.f32 %v352, 0.0
      %v365 = vmax.f32 %v355, 0.0
      %v366 = vpack.c.bf16 %v359, %v358
      %v367 = vpack.c.bf16 %v361, %v360
      %v368 = vpack.c.bf16 %v363, %v362
      %v369 = vpack.c.bf16 %v365, %v364
      %v370 = vld [vmem:[%s3] sm:$0xf]
      %v371 = vld [vmem:[%s3 + $0x4] sm:$0xf]
      %v372 = vld [vmem:[%s3 + $0x8] sm:$0xf]
      %v373 = vld [vmem:[%s3 + $0xc] sm:$0xf]
      %v374 = vld [vmem:[%s4] sm:$0x1]
      %v376 = vlaneseq
      %v377 = vshrl.u32 %v376, 7
      %v378 = vsub.s32 0, %v377
      %v379 = vrot.slane %v374, %v378
      %v385 = vunpack.c.l.b16 %v370
      %v386 = vunpack.c.l.b16 %v371
      %v387 = vunpack.c.l.b16 %v372
      %v388 = vunpack.c.l.b16 %v373
      %v389 = vpack.c.b16 %v386, %v385
      %v390 = vpack.c.b16 %v388, %v387
      %v394 = vsel %vm280, %v366, 0
      %v397 = vsel %vm280, %v367, 0
      %v400 = vsel %vm280, %v368, 0
      %v403 = vsel %vm280, %v369, 0
      %405 = vmatprep.subr.bf16.mxu0 0
      %406 = vmatpush1.bf16.msra.mxu0 %v389
      %407 = vmatprep.subr.bf16.mxu0 0
      %408 = vmatpush1.bf16.msra.mxu0 %v390
      %409 = vmatprep.subr.bf16.mxu0 0
      %410 = vmatpush1.bf16.msra.mxu0 0
      %411 = vmatprep.subr.bf16.mxu0 0
      %412 = vmatpush1.bf16.msra.mxu0 0
      %413 = vmatprep.subr.bf16.mxu0 0
      %414 = vmatpush1.bf16.msra.mxu0 0
      %415 = vmatprep.subr.bf16.mxu0 0
      %416 = vmatpush1.bf16.msra.mxu0 0
      %417 = vmatprep.subr.bf16.mxu0 0
      %418 = vmatpush1.bf16.msra.mxu0 0
      %419 = vmatprep.subr.bf16.mxu0 0
      %420 = vmatpush1.bf16.msra.mxu0 0
      %421 = vmatprep.subr.bf16.mxu0 0
      %422 = vmatpush1.bf16.msra.mxu0 0
      %423 = vmatprep.subr.bf16.mxu0 0
      %424 = vmatpush1.bf16.msra.mxu0 0
      %425 = vmatprep.subr.bf16.mxu0 0
      %426 = vmatpush1.bf16.msra.mxu0 0
      %427 = vmatprep.subr.bf16.mxu0 0
      %428 = vmatpush1.bf16.msra.mxu0 0
      %429 = vmatprep.subr.bf16.mxu0 0
      %430 = vmatpush1.bf16.msra.mxu0 0
      %431 = vmatprep.subr.bf16.mxu0 0
      %432 = vmatpush1.bf16.msra.mxu0 0
      %433 = vmatprep.subr.bf16.mxu0 0
      %434 = vmatpush1.bf16.msra.mxu0 0
      %435 = vmatprep.subr.bf16.mxu0 0
      %436 = vmatpush1.bf16.msra.mxu0 0
      %437 = vmatprep.mubr.bf16.mxu0 0
      %438 = vmatmul.mubr.bf16.gmra.mrb[0].mxu0 %v394
      %v439 = vpop.f32.mrb[0].mxu0
      %v440 = vadd.f32 %v379, %v439
      %v441 = vpop.f32.mrb[0].mxu0
      %v442 = vpop.f32.mrb[0].mxu0
      %v443 = vadd.f32 %v379, %v442
      %v444 = vpop.f32.mrb[0].mxu0
      %445 = vmatprep.mubr.bf16.mxu0 0
      %446 = vmatmul.mubr.bf16.gmra.mrb[0].mxu0 %v397
      %v447 = vpop.f32.mrb[0].mxu0
      %v448 = vadd.f32 %v379, %v447
      %v449 = vpop.f32.mrb[0].mxu0
      %v450 = vpop.f32.mrb[0].mxu0
      %v451 = vadd.f32 %v379, %v450
      %v452 = vpop.f32.mrb[0].mxu0
      %453 = vmatprep.mubr.bf16.mxu0 0
      %454 = vmatmul.mubr.bf16.gmra.mrb[0].mxu0 %v400
      %v455 = vpop.f32.mrb[0].mxu0
      %v456 = vadd.f32 %v379, %v455
      %v457 = vpop.f32.mrb[0].mxu0
      %v458 = vpop.f32.mrb[0].mxu0
      %v459 = vadd.f32 %v379, %v458
      %v460 = vpop.f32.mrb[0].mxu0
      %461 = vmatprep.mubr.bf16.mxu0 0
      %462 = vmatmul.mubr.bf16.gmra.mrb[0].mxu0 %v403
      %v463 = vpop.f32.mrb[0].mxu0
      %v464 = vadd.f32 %v379, %v463
      %v465 = vpop.f32.mrb[0].mxu0
      %v466 = vpop.f32.mrb[0].mxu0
      %v467 = vadd.f32 %v379, %v466
      %v468 = vpop.f32.mrb[0].mxu0
      %469 = vdwg.mxu0
      %v470 = vmax.f32 %v440, 0.0
      %v471 = vmax.f32 %v443, 0.0
      %v472 = vmax.f32 %v448, 0.0
      %v473 = vmax.f32 %v451, 0.0
      %v474 = vmax.f32 %v456, 0.0
      %v475 = vmax.f32 %v459, 0.0
      %v476 = vmax.f32 %v464, 0.0
      %v477 = vmax.f32 %v467, 0.0
      %478 = vst.msk [vmem:[%s226] sm:$0xff] %vm280, %v470
      %479 = vst.msk [vmem:[%s226 + $0x8] sm:$0xff] %vm280, %v471
      %480 = vst.msk [vmem:[%s226 + $0x10] sm:$0xff] %vm280, %v472
      %481 = vst.msk [vmem:[%s226 + $0x18] sm:$0xff] %vm280, %v473
      %482 = vst.msk [vmem:[%s226 + $0x20] sm:$0xff] %vm280, %v474
      %483 = vst.msk [vmem:[%s226 + $0x28] sm:$0xff] %vm280, %v475
      %484 = vst.msk [vmem:[%s226 + $0x30] sm:$0xff] %vm280, %v476
      %485 = vst.msk [vmem:[%s226 + $0x38] sm:$0xff] %vm280, %v477
      %s486 = smul.u32 8, %s16
      %p487 = scmp.lt.s32.totalorder %s486, 15
      %s488 = scalar_select %p487, %s486, 15
      %s489 = smul.addr %s488, 8
      %s490 = scalar_lea.vmem %s5, %s489
      // Predicated region
      $region41: #{tpu_custom_call.1} parent=39 // pred_check
        %p491 = pneg %p144
      $region42: #{tpu_custom_call.1} parent=39 // pred_check_branch
        %493 = sbr.rel (%p491) target = $region44
      $region43: #{tpu_custom_call.1} parent=39 // pred_region
        %s494 = smul.u32 8, %s16
      $region44: #{tpu_custom_call.1} parent=39 // pred_fallthru
        _
    $region40: #{tpu_custom_call.1} parent=5 // pred_fallthru
      _
    %p495 = scmp.le.s32.totalorder 2, %s11
    // Predicated region
    $region45: #{tpu_custom_call.1} parent=5 // pred_check
      %p496 = pneg %p495
    $region46: #{tpu_custom_call.1} parent=5 // pred_check_branch
      %498 = sbr.rel (%p496) target = $region48
    $region47: #{tpu_custom_call.1} parent=5 // pred_region
      %s499 = ssub.s32 %s11, 2
      // Predicated region
      $region49: #{tpu_custom_call.1} parent=47 // pred_check
        %p500 = pneg %p150
      $region50: #{tpu_custom_call.1} parent=47 // pred_check_branch
        %502 = sbr.rel (%p500) target = $region52
      $region51: #{tpu_custom_call.1} parent=47 // pred_region
        %s503 = smul.u32 8, %s17
        %p504 = scmp.lt.s32.totalorder %s503, 15
        %s505 = scalar_select %p504, %s503, 15
        %s506 = smul.addr %s505, 8
        %s507 = scalar_lea.vmem %s5, %s506
      $region52: #{tpu_custom_call.1} parent=47 // pred_fallthru
        _
    $region48: #{tpu_custom_call.1} parent=5 // pred_fallthru
      _
  $region6: #{tpu_custom_call.1} parent=0 // loop_footer
    %s15 = sadd.s32 1, %s11
  $region7: #{tpu_custom_call.1} parent=0 // loop_footer_branch
    %10 = sbr.rel target = $region3
  $region8: #{tpu_custom_call.1} parent=0 // loop_exit
    _

</llo_original>
